<compile_context>
chip_gen: v6e
topology: v6e:2x2x1
jax: 0.10.0
libtpu: 0.0.40
codegen_flags: <defaults>
</compile_context>

<pallas_src>
import functools

import jax
import jax.numpy as jnp
from jax.experimental import pallas as pl
from jax.experimental.pallas import tpu as pltpu


_LANES = 128
_DEFAULT_BLOCK_ROWS = 2048   # u/f stream block rows; grad stream uses 2x


def _round_up(x, m):
    return ((x + m - 1) // m) * m


def _cdiv(a, b):
    return -(-a // b)


def _lane_views(arrays, max_block_rows):
    """Flatten same-length arrays into lane-dense (rows, 128) views.

    Zero-copy reshape when the flat length is already a multiple of the
    sublane chunk; otherwise only a small zero tail-pad (no stacking, no
    whole-block padding).  Returns (views, rows, block_rows, num_blocks)."""
    n = int(arrays[0].size)
    sub = 8
    for a in arrays:
        sub = max(sub, 8 * max(1, 4 // a.dtype.itemsize))   # 8 f32 / 16 bf16 / 32 i8
    chunk = sub * _LANES
    padded = _round_up(max(n, 1), chunk)
    views = []
    for a in arrays:
        flat = jnp.reshape(a, (-1,))
        if padded != n:
            flat = jnp.pad(flat, (0, padded - n))           # small tail pad only
        views.append(jnp.reshape(flat, (padded // _LANES, _LANES)))
    rows = padded // _LANES
    blk = min(_round_up(max(int(max_block_rows), 1), sub), rows)
    return views, rows, blk, _cdiv(rows, blk)


def _vmem_budget(needed):
    """Generation-aware VMEM limit (45% of physical, sane floors/caps)."""
    try:
        info = pltpu.get_tpu_info()
        phys = int(getattr(info, "vmem_capacity_bytes", 64 << 20))
    except Exception:
        phys = 64 << 20
    cap = max(24 << 20, (phys * 45) // 100)
    return int(min(max(needed, 16 << 20), cap))


def _deep_ritz_kernel(g_ref, u_ref, f_ref, ub_ref, gb_ref, out_ref,
                      acc_int, acc_b, *,
                      pc_g, nb_g, rows_g, blk_g,
                      pc_uf, nb_uf, rows_uf, blk_uf,
                      pc_b, nb_b, rows_b, blk_b,
                      inv_n_omega, inv_n_boundary, boundary_regulizer):
    c = pl.program_id(0)     # core split index ("parallel")
    i = pl.program_id(1)     # per-core block index ("arbitrary")

    @pl.when(i == 0)
    def _init():
        acc_int[...] = jnp.zeros_like(acc_int)
        acc_b[...] = jnp.zeros_like(acc_b)

    def partial_sum(val, block_idx, blk, rows):
        # Mask the ragged last block (unspecified rows past `rows`), then
        # reduce the (blk,128) tile to one (8,128) partial.  The reshape
        # splits the sublane dim on an 8-row boundary (stays a view); the
        # axis-0 sum is pure VPU vreg adds.
        if rows % blk != 0:                                  # static check
            row = jax.lax.broadcasted_iota(jnp.int32, val.shape, 0)
            val = jnp.where(row < rows - block_idx * blk, val, 0.0)
        return jnp.sum(val.reshape(-1, 8, _LANES), axis=0)

    # --- interior: |grad u|^2 (flattened grad_u; channel-agnostic) ---------
    bg = c * pc_g + i

    @pl.when((i < pc_g) & (bg < nb_g))
    def _grad():
        g = g_ref[...].astype(jnp.float32)
        acc_int[...] += partial_sum(g * g, bg, blk_g, rows_g)

    # --- interior: -2 * f(x) * u(x), folded into the same accumulator ------
    buf = c * pc_uf + i

    @pl.when((i < pc_uf) & (buf < nb_uf))
    def _fu():
        u = u_ref[...].astype(jnp.float32)
        f = f_ref[...].astype(jnp.float32)
        acc_int[...] += (-2.0) * partial_sum(f * u, buf, blk_uf, rows_uf)

    # --- boundary: (u_b - g_b)^2 --------------------------------------------
    bb = c * pc_b + i

    @pl.when((i < pc_b) & (bb < nb_b))
    def _bnd():
        d = ub_ref[...].astype(jnp.float32) - gb_ref[...].astype(jnp.float32)
        acc_b[...] += partial_sum(d * d, bb, blk_b, rows_b)

    # --- per-core epilogue: apply loss weights once; the tiny cross-lane
    #     reduce of the (num_splits*8, 128) output happens in the wrapper. ---
    @pl.when(i == pl.num_programs(1) - 1)
    def _finalize():
        out_ref[...] = ((2.0 * inv_n_omega) * acc_int[...]
                        + (boundary_regulizer * inv_n_boundary) * acc_b[...])


def deep_ritz_loss(grad_u, output_ux_in_omega, true_operator_x,
                   output_on_boundary, true_value_on_boundary,
                   boundary_regulizer=500.0,
                   max_block_rows=_DEFAULT_BLOCK_ROWS,
                   num_splits=2):
    n_omega = int(grad_u.shape[0])
    n_boundary = int(output_on_boundary.size)

    # Lane-dense views (layout plumbing only; no loss math hoisted to XLA).
    (g2d,), rows_g, blk_g, nb_g = _lane_views([grad_u], 2 * max_block_rows)
    (u2d, f2d), rows_uf, blk_uf, nb_uf = _lane_views(
        [output_ux_in_omega, true_operator_x], max_block_rows)
    (ub2d, gb2d), rows_b, blk_b, nb_b = _lane_views(
        [output_on_boundary, true_value_on_boundary], max_block_rows)

    num_splits = max(1, int(num_splits))
    pc_g = _cdiv(nb_g, num_splits)
    pc_uf = _cdiv(nb_uf, num_splits)
    pc_b = _cdiv(nb_b, num_splits)
    grid_inner = max(pc_g, pc_uf, pc_b, 1)

    kernel = functools.partial(
        _deep_ritz_kernel,
        pc_g=pc_g, nb_g=nb_g, rows_g=rows_g, blk_g=blk_g,
        pc_uf=pc_uf, nb_uf=nb_uf, rows_uf=rows_uf, blk_uf=blk_uf,
        pc_b=pc_b, nb_b=nb_b, rows_b=rows_b, blk_b=blk_b,
        inv_n_omega=1.0 / float(n_omega),
        inv_n_boundary=1.0 / float(n_boundary),
        boundary_regulizer=float(boundary_regulizer))

    # Clamped index maps; compute is guarded by pl.when in the kernel.
    g_spec = pl.BlockSpec(
        (blk_g, _LANES), lambda c, i: (jnp.minimum(c * pc_g + i, nb_g - 1), 0))
    uf_map = lambda c, i: (jnp.minimum(c * pc_uf + i, nb_uf - 1), 0)
    u_spec = pl.BlockSpec((blk_uf, _LANES), uf_map)
    f_spec = pl.BlockSpec((blk_uf, _LANES), uf_map)
    b_map = lambda c, i: (jnp.minimum(c * pc_b + i, nb_b - 1), 0)
    ub_spec = pl.BlockSpec((blk_b, _LANES), b_map)
    gb_spec = pl.BlockSpec((blk_b, _LANES), b_map)
    out_spec = pl.BlockSpec((8, _LANES), lambda c, i: (c, 0))

    per_step_bytes = _LANES * (
        blk_g * g2d.dtype.itemsize
        + blk_uf * (u2d.dtype.itemsize + f2d.dtype.itemsize)
        + blk_b * (ub2d.dtype.itemsize + gb2d.dtype.itemsize))
    vmem_limit = _vmem_budget(2 * per_step_bytes + 3 * 8 * _LANES * 4 + (4 << 20))

    bytes_accessed = int(g2d.nbytes + u2d.nbytes + f2d.nbytes
                         + ub2d.nbytes + gb2d.nbytes
                         + num_splits * 8 * _LANES * 4)
    cost = pl.CostEstimate(flops=int(6 * n_omega + 3 * n_boundary),
                           transcendentals=0,
                           bytes_accessed=bytes_accessed)

    out = pl.pallas_call(
        kernel,
        out_shape=jax.ShapeDtypeStruct((num_splits * 8, _LANES), jnp.float32),
        grid_spec=pltpu.PrefetchScalarGridSpec(
            num_scalar_prefetch=0,
            grid=(num_splits, grid_inner),
            in_specs=[g_spec, u_spec, f_spec, ub_spec, gb_spec],
            out_specs=out_spec,
            scratch_shapes=[
                pltpu.VMEM((8, _LANES), jnp.float32),   # sum g^2 - 2 f u
                pltpu.VMEM((8, _LANES), jnp.float32),   # sum (u_b - g_b)^2
            ]),
        compiler_params=pltpu.CompilerParams(
            dimension_semantics=("parallel", "arbitrary"),
            vmem_limit_bytes=vmem_limit),
        cost_estimate=cost,
    )(g2d, u2d, f2d, ub2d, gb2d)

    # Tiny (num_splits*8, 128) weighted partials -> scalar loss.
    return jnp.sum(out)


# ---- glue: a small synthetic network u(x) so the autograd term is well-defined ----
def make_mlp_params(key, hidden=32):
    k1, k2, k3, k4 = jax.random.split(key, 4)
    return {
        "W1": jax.random.normal(k1, (2, hidden), jnp.float32) * 0.5,
        "b1": jax.random.normal(k2, (hidden,), jnp.float32) * 0.1,
        "W2": jax.random.normal(k3, (hidden, 1), jnp.float32) * 0.5,
        "b2": jax.random.normal(k4, (1,), jnp.float32) * 0.1,
    }


def u_fn(params, x):
    h = jnp.tanh(x @ params["W1"] + params["b1"])
    return h @ params["W2"] + params["b2"]   # (N, 1)


def reference_loss(grad_u, u_om, f_om, u_b, g_b, reg=500.0):
    term1 = jnp.mean(grad_u[:, 0] ** 2 + grad_u[:, 1] ** 2)
    term2 = jnp.mean(f_om * u_om)
    bloss = jnp.mean((u_b - g_b) ** 2)
    return 4.0 * 0.5 * term1 - 4.0 * term2 + reg * bloss


if __name__ == "__main__":
    key = jax.random.PRNGKey(0)
    k_p, k_x, k_f, k_xb, k_gb, k2 = jax.random.split(key, 6)

    # --- test 1: small, non-multiple-of-128 shapes (exercises the small tail
    #             pad + single-block path), with the autograd glue mimicking
    #             torch.autograd.grad. ---
    N, M = 300, 100
    params = make_mlp_params(k_p, hidden=32)

    x_in_omega = jax.random.uniform(k_x, (N, 2), jnp.float32, -1.0, 1.0)
    x_boundary = jax.random.uniform(k_xb, (M, 2), jnp.float32, -1.0, 1.0)
    true_operator_x = jax.random.normal(k_f, (N, 1), jnp.float32)
    true_value_on_boundary = jax.random.normal(k_gb, (M, 1), jnp.float32)

    output_ux_in_omega = u_fn(params, x_in_omega)             # (N, 1)
    output_on_boundary = u_fn(params, x_boundary)             # (M, 1)
    # torch.autograd.grad(outputs=u, inputs=x, grad_outputs=ones) == d(sum u)/dx
    grad_u = jax.grad(lambda xx: jnp.sum(u_fn(params, xx)))(x_in_omega)  # (N, 2)

    loss = deep_ritz_loss(grad_u, output_ux_in_omega, true_operator_x,
                          output_on_boundary, true_value_on_boundary,
                          boundary_regulizer=500.0)
    loss = jax.block_until_ready(loss)
    ref = reference_loss(grad_u, output_ux_in_omega, true_operator_x,
                         output_on_boundary, true_value_on_boundary, 500.0)
    assert jnp.allclose(loss, ref, rtol=2e-5, atol=1e-3), (loss, ref)

    # --- test 2: multi-block grid + 2-way core split + ragged last blocks
    #             (small block rows force >1 block per stream per core). ---
    N2, M2 = 5000, 5000
    ka, kb, kc, kd, ke = jax.random.split(k2, 5)
    grad_u2 = jax.random.normal(ka, (N2, 2), jnp.float32)
    u2 = jax.random.normal(kb, (N2, 1), jnp.float32)
    f2 = jax.random.normal(kc, (N2, 1), jnp.float32)
    ub2 = jax.random.normal(kd, (M2, 1), jnp.float32)
    gb2 = jax.random.normal(ke, (M2, 1), jnp.float32)

    loss2 = deep_ritz_loss(grad_u2, u2, f2, ub2, gb2,
                           boundary_regulizer=5.0,
                           max_block_rows=16, num_splits=2)
    loss2 = jax.block_until_ready(loss2)
    ref2 = reference_loss(grad_u2, u2, f2, ub2, gb2, 5.0)
    assert jnp.allclose(loss2, ref2, rtol=2e-4, atol=2e-3), (loss2, ref2)

    print("KERNEL_OK")
</pallas_src>

<mosaic_0001>
module attributes {stable_mosaic.version = 11 : i64} {
  func.func @_deep_ritz_kernel(%arg0: i32, %arg1: i32, %arg2: memref<8x128xf32, #tpu.memory_space<vmem>>, %arg3: memref<8x128xf32, #tpu.memory_space<vmem>>, %arg4: memref<8x128xf32, #tpu.memory_space<vmem>>, %arg5: memref<8x128xf32, #tpu.memory_space<vmem>>, %arg6: memref<8x128xf32, #tpu.memory_space<vmem>>, %arg7: memref<8x128xf32, #tpu.memory_space<vmem>>, %arg8: memref<8x128xf32, #tpu.memory_space<vmem>>, %arg9: memref<8x128xf32, #tpu.memory_space<vmem>>) attributes {dimension_semantics = [#tpu.dimension_semantics<parallel>, #tpu.dimension_semantics<arbitrary>], iteration_bounds = array<i64: 2, 1>, scalar_prefetch = 0 : i64, scratch_operands = 2 : i64, tpu.core_type = #tpu.core_type<tc>, window_params = [{transform_indices = @transform_0, window_bounds = array<i64: 8, 128>}, {transform_indices = @transform_1, window_bounds = array<i64: 8, 128>}, {transform_indices = @transform_2, window_bounds = array<i64: 8, 128>}, {transform_indices = @transform_3, window_bounds = array<i64: 8, 128>}, {transform_indices = @transform_4, window_bounds = array<i64: 8, 128>}, {transform_indices = @transform_5, window_bounds = array<i64: 8, 128>}]} {
    %c0_i32 = arith.constant 0 : i32
    %0 = arith.cmpi eq, %arg1, %c0_i32 : i32
    %1 = arith.extui %0 : i1 to i32
    %c0_i32_0 = arith.constant 0 : i32
    %2 = arith.cmpi ne, %1, %c0_i32_0 : i32
    scf.if %2 {
      %cst = arith.constant 0.000000e+00 : f32
      %27 = vector.broadcast %cst : f32 to vector<8x128xf32>
      %c0 = arith.constant 0 : index
      %c0_14 = arith.constant 0 : index
      %28 = vector.load %arg8[%c0, %c0_14] : memref<8x128xf32, #tpu.memory_space<vmem>>, vector<8x128xf32>
      tpu.vector_store %arg8[%c0, %c0_14], %27 {strides = array<i32>} : memref<8x128xf32, #tpu.memory_space<vmem>>, vector<8x128xf32>,
      %cst_15 = arith.constant 0.000000e+00 : f32
      %29 = vector.broadcast %cst_15 : f32 to vector<8x128xf32>
      %c0_16 = arith.constant 0 : index
      %c0_17 = arith.constant 0 : index
      %30 = vector.load %arg9[%c0_16, %c0_17] : memref<8x128xf32, #tpu.memory_space<vmem>>, vector<8x128xf32>
      tpu.vector_store %arg9[%c0_16, %c0_17], %29 {strides = array<i32>} : memref<8x128xf32, #tpu.memory_space<vmem>>, vector<8x128xf32>,
    } else {
    }
    %c1_i32 = arith.constant 1 : i32
    %3 = arith.muli %arg0, %c1_i32 : i32
    %4 = arith.addi %3, %arg1 : i32
    %c1_i32_1 = arith.constant 1 : i32
    %5 = arith.cmpi slt, %arg1, %c1_i32_1 : i32
    %c1_i32_2 = arith.constant 1 : i32
    %6 = arith.cmpi slt, %4, %c1_i32_2 : i32
    %7 = arith.andi %5, %6 : i1
    %8 = arith.extui %7 : i1 to i32
    %c0_i32_3 = arith.constant 0 : i32
    %9 = arith.cmpi ne, %8, %c0_i32_3 : i32
    scf.if %9 {
      %c0 = arith.constant 0 : index
      %c0_14 = arith.constant 0 : index
      %27 = vector.load %arg2[%c0, %c0_14] : memref<8x128xf32, #tpu.memory_space<vmem>>, vector<8x128xf32>
      %c0_15 = arith.constant 0 : index
      %c0_16 = arith.constant 0 : index
      %28 = vector.load %arg8[%c0_15, %c0_16] : memref<8x128xf32, #tpu.memory_space<vmem>>, vector<8x128xf32>
      %29 = arith.mulf %27, %27 : vector<8x128xf32>
      %30 = vector.shape_cast %29 : vector<8x128xf32> to vector<1x8x128xf32>
      %cst = arith.constant dense<0.000000e+00> : vector<8x128xf32>
      %31 = vector.multi_reduction <add>, %30, %cst [0] : vector<1x8x128xf32> to vector<8x128xf32>
      %32 = arith.addf %28, %31 : vector<8x128xf32>
      %c0_17 = arith.constant 0 : index
      %c0_18 = arith.constant 0 : index
      %33 = vector.load %arg8[%c0_17, %c0_18] : memref<8x128xf32, #tpu.memory_space<vmem>>, vector<8x128xf32>
      tpu.vector_store %arg8[%c0_17, %c0_18], %32 {strides = array<i32>} : memref<8x128xf32, #tpu.memory_space<vmem>>, vector<8x128xf32>,
    } else {
    }
    %c1_i32_4 = arith.constant 1 : i32
    %10 = arith.muli %arg0, %c1_i32_4 : i32
    %11 = arith.addi %10, %arg1 : i32
    %c1_i32_5 = arith.constant 1 : i32
    %12 = arith.cmpi slt, %arg1, %c1_i32_5 : i32
    %c1_i32_6 = arith.constant 1 : i32
    %13 = arith.cmpi slt, %11, %c1_i32_6 : i32
    %14 = arith.andi %12, %13 : i1
    %15 = arith.extui %14 : i1 to i32
    %c0_i32_7 = arith.constant 0 : i32
    %16 = arith.cmpi ne, %15, %c0_i32_7 : i32
    scf.if %16 {
      %c0 = arith.constant 0 : index
      %c0_14 = arith.constant 0 : index
      %27 = vector.load %arg3[%c0, %c0_14] : memref<8x128xf32, #tpu.memory_space<vmem>>, vector<8x128xf32>
      %c0_15 = arith.constant 0 : index
      %c0_16 = arith.constant 0 : index
      %28 = vector.load %arg4[%c0_15, %c0_16] : memref<8x128xf32, #tpu.memory_space<vmem>>, vector<8x128xf32>
      %c0_17 = arith.constant 0 : index
      %c0_18 = arith.constant 0 : index
      %29 = vector.load %arg8[%c0_17, %c0_18] : memref<8x128xf32, #tpu.memory_space<vmem>>, vector<8x128xf32>
      %30 = arith.mulf %28, %27 : vector<8x128xf32>
      %31 = vector.shape_cast %30 : vector<8x128xf32> to vector<1x8x128xf32>
      %cst = arith.constant dense<0.000000e+00> : vector<8x128xf32>
      %32 = vector.multi_reduction <add>, %31, %cst [0] : vector<1x8x128xf32> to vector<8x128xf32>
      %cst_19 = arith.constant -2.000000e+00 : f32
      %33 = vector.broadcast %cst_19 : f32 to vector<8x128xf32>
      %34 = arith.mulf %33, %32 : vector<8x128xf32>
      %35 = arith.addf %29, %34 : vector<8x128xf32>
      %c0_20 = arith.constant 0 : index
      %c0_21 = arith.constant 0 : index
      %36 = vector.load %arg8[%c0_20, %c0_21] : memref<8x128xf32, #tpu.memory_space<vmem>>, vector<8x128xf32>
      tpu.vector_store %arg8[%c0_20, %c0_21], %35 {strides = array<i32>} : memref<8x128xf32, #tpu.memory_space<vmem>>, vector<8x128xf32>,
    } else {
    }
    %c1_i32_8 = arith.constant 1 : i32
    %17 = arith.muli %arg0, %c1_i32_8 : i32
    %18 = arith.addi %17, %arg1 : i32
    %c1_i32_9 = arith.constant 1 : i32
    %19 = arith.cmpi slt, %arg1, %c1_i32_9 : i32
    %c1_i32_10 = arith.constant 1 : i32
    %20 = arith.cmpi slt, %18, %c1_i32_10 : i32
    %21 = arith.andi %19, %20 : i1
    %22 = arith.extui %21 : i1 to i32
    %c0_i32_11 = arith.constant 0 : i32
    %23 = arith.cmpi ne, %22, %c0_i32_11 : i32
    scf.if %23 {
      %c0 = arith.constant 0 : index
      %c0_14 = arith.constant 0 : index
      %27 = vector.load %arg5[%c0, %c0_14] : memref<8x128xf32, #tpu.memory_space<vmem>>, vector<8x128xf32>
      %c0_15 = arith.constant 0 : index
      %c0_16 = arith.constant 0 : index
      %28 = vector.load %arg6[%c0_15, %c0_16] : memref<8x128xf32, #tpu.memory_space<vmem>>, vector<8x128xf32>
      %29 = arith.subf %27, %28 : vector<8x128xf32>
      %c0_17 = arith.constant 0 : index
      %c0_18 = arith.constant 0 : index
      %30 = vector.load %arg9[%c0_17, %c0_18] : memref<8x128xf32, #tpu.memory_space<vmem>>, vector<8x128xf32>
      %31 = arith.mulf %29, %29 : vector<8x128xf32>
      %32 = vector.shape_cast %31 : vector<8x128xf32> to vector<1x8x128xf32>
      %cst = arith.constant dense<0.000000e+00> : vector<8x128xf32>
      %33 = vector.multi_reduction <add>, %32, %cst [0] : vector<1x8x128xf32> to vector<8x128xf32>
      %34 = arith.addf %30, %33 : vector<8x128xf32>
      %c0_19 = arith.constant 0 : index
      %c0_20 = arith.constant 0 : index
      %35 = vector.load %arg9[%c0_19, %c0_20] : memref<8x128xf32, #tpu.memory_space<vmem>>, vector<8x128xf32>
      tpu.vector_store %arg9[%c0_19, %c0_20], %34 {strides = array<i32>} : memref<8x128xf32, #tpu.memory_space<vmem>>, vector<8x128xf32>,
    } else {
    }
    %c0_i32_12 = arith.constant 0 : i32
    %24 = arith.cmpi eq, %arg1, %c0_i32_12 : i32
    %25 = arith.extui %24 : i1 to i32
    %c0_i32_13 = arith.constant 0 : i32
    %26 = arith.cmpi ne, %25, %c0_i32_13 : i32
    scf.if %26 {
      %c0 = arith.constant 0 : index
      %c0_14 = arith.constant 0 : index
      %27 = vector.load %arg8[%c0, %c0_14] : memref<8x128xf32, #tpu.memory_space<vmem>>, vector<8x128xf32>
      %cst = arith.constant 0.00666666683 : f32
      %28 = vector.broadcast %cst : f32 to vector<8x128xf32>
      %29 = arith.mulf %28, %27 : vector<8x128xf32>
      %c0_15 = arith.constant 0 : index
      %c0_16 = arith.constant 0 : index
      %30 = vector.load %arg9[%c0_15, %c0_16] : memref<8x128xf32, #tpu.memory_space<vmem>>, vector<8x128xf32>
      %cst_17 = arith.constant 5.000000e+00 : f32
      %31 = vector.broadcast %cst_17 : f32 to vector<8x128xf32>
      %32 = arith.mulf %31, %30 : vector<8x128xf32>
      %33 = arith.addf %29, %32 : vector<8x128xf32>
      %c0_18 = arith.constant 0 : index
      %c0_19 = arith.constant 0 : index
      %34 = vector.load %arg7[%c0_18, %c0_19] : memref<8x128xf32, #tpu.memory_space<vmem>>, vector<8x128xf32>
      tpu.vector_store %arg7[%c0_18, %c0_19], %33 {strides = array<i32>} : memref<8x128xf32, #tpu.memory_space<vmem>>, vector<8x128xf32>,
    } else {
    }
    return
  }
  func.func @transform_0(%arg0: i32, %arg1: i32) -> (i32, i32) {
    %c1_i32 = arith.constant 1 : i32
    %0 = arith.muli %arg0, %c1_i32 : i32
    %1 = arith.addi %0, %arg1 : i32
    %c0_i32 = arith.constant 0 : i32
    %2 = arith.minsi %1, %c0_i32 : i32
    %c0_i32_0 = arith.constant 0 : i32
    %c0_i32_1 = arith.constant 0 : i32
    return %2, %c0_i32_0 : i32, i32
  }
  func.func @transform_1(%arg0: i32, %arg1: i32) -> (i32, i32) {
    %c1_i32 = arith.constant 1 : i32
    %0 = arith.muli %arg0, %c1_i32 : i32
    %1 = arith.addi %0, %arg1 : i32
    %c0_i32 = arith.constant 0 : i32
    %2 = arith.minsi %1, %c0_i32 : i32
    %c0_i32_0 = arith.constant 0 : i32
    %c0_i32_1 = arith.constant 0 : i32
    return %2, %c0_i32_0 : i32, i32
  }
  func.func @transform_2(%arg0: i32, %arg1: i32) -> (i32, i32) {
    %c1_i32 = arith.constant 1 : i32
    %0 = arith.muli %arg0, %c1_i32 : i32
    %1 = arith.addi %0, %arg1 : i32
    %c0_i32 = arith.constant 0 : i32
    %2 = arith.minsi %1, %c0_i32 : i32
    %c0_i32_0 = arith.constant 0 : i32
    %c0_i32_1 = arith.constant 0 : i32
    return %2, %c0_i32_0 : i32, i32
  }
  func.func @transform_3(%arg0: i32, %arg1: i32) -> (i32, i32) {
    %c1_i32 = arith.constant 1 : i32
    %0 = arith.muli %arg0, %c1_i32 : i32
    %1 = arith.addi %0, %arg1 : i32
    %c0_i32 = arith.constant 0 : i32
    %2 = arith.minsi %1, %c0_i32 : i32
    %c0_i32_0 = arith.constant 0 : i32
    %c0_i32_1 = arith.constant 0 : i32
    return %2, %c0_i32_0 : i32, i32
  }
  func.func @transform_4(%arg0: i32, %arg1: i32) -> (i32, i32) {
    %c1_i32 = arith.constant 1 : i32
    %0 = arith.muli %arg0, %c1_i32 : i32
    %1 = arith.addi %0, %arg1 : i32
    %c0_i32 = arith.constant 0 : i32
    %2 = arith.minsi %1, %c0_i32 : i32
    %c0_i32_0 = arith.constant 0 : i32
    %c0_i32_1 = arith.constant 0 : i32
    return %2, %c0_i32_0 : i32, i32
  }
  func.func @transform_5(%arg0: i32, %arg1: i32) -> (i32, i32) {
    %c0_i32 = arith.constant 0 : i32
    %c0_i32_0 = arith.constant 0 : i32
    return %arg0, %c0_i32 : i32, i32
  }
}

</mosaic_0001>

<llo_original>
// kernel: tpu_custom_call.1
$region0: #{tpu_custom_call.1}
  #allocation0 [shape = 'u32[]', space=smem, size = 0x4, offset = 0x4, fixed_abs, tag = 'smem constant byte address 0x4 - core index']
  #allocation1 [shape = 'u32[144,128]{1,0:T(1,128)}', space=vmem, size = 0x12000, scoped, tag = 'internal scratch']
  #allocation2 [shape = 'f32[8,128]{1,0:T(8,128)}', space=vmem, size = 0x1000, scoped, tag = 'scratch operand']
  #allocation3 [shape = 'f32[8,128]{1,0:T(8,128)}', space=vmem, size = 0x1000, scoped, tag = 'scratch operand']
  %s0 = inlined_call_operand.hbm [shape: f32[8,128], index: 0, kind: input, shape index: {}]
  %s1 = inlined_call_operand.hbm [shape: f32[8,128], index: 1, kind: input, shape index: {}]
  %s2 = inlined_call_operand.hbm [shape: f32[8,128], index: 2, kind: input, shape index: {}]
  %s3 = inlined_call_operand.hbm [shape: f32[8,128], index: 3, kind: input, shape index: {}]
  %s4 = inlined_call_operand.hbm [shape: f32[8,128], index: 4, kind: input, shape index: {}]
  %s5 = inlined_call_operand.hbm [shape: f32[16,128], index: 5, kind: output, shape index: {}]
  %s6 = sld [smem:[#allocation0]]
  $region85: #{tpu_custom_call.1} parent=0
    _
  %s8 = ssub.s32 1, %s6
  %s9 = scalar_select 0, %s8, %s6
  $region1: #{tpu_custom_call.1} parent=0
    #allocation4 [shape = 'u8[8192]{0}', space=vmem, size = 0x2000, scoped, tag = 'input window, operand 0']
    #allocation5 [shape = 's32[2]{0}', space=sflag, size = 0x8, scoped, tag = 'scoped memory for tpu_custom_call.1']
    #allocation6 [shape = 's32[2]{0}', space=sflag, size = 0x8, scoped, tag = 'scoped memory for tpu_custom_call.1']
    #allocation7 [shape = 'u8[8192]{0}', space=vmem, size = 0x2000, scoped, tag = 'input window, operand 1']
    #allocation8 [shape = 's32[2]{0}', space=sflag, size = 0x8, scoped, tag = 'scoped memory for tpu_custom_call.1']
    #allocation9 [shape = 'u8[8192]{0}', space=vmem, size = 0x2000, scoped, tag = 'input window, operand 2']
    #allocation10 [shape = 'u8[8192]{0}', space=vmem, size = 0x2000, scoped, tag = 'input window, operand 3']
    #allocation11 [shape = 's32[2]{0}', space=sflag, size = 0x8, scoped, tag = 'scoped memory for tpu_custom_call.1']
    #allocation12 [shape = 'u8[8192]{0}', space=vmem, size = 0x2000, scoped, tag = 'input window, operand 4']
    #allocation13 [shape = 'u8[8192]{0}', space=vmem, size = 0x2000, scoped, tag = 'output window, operand 0']
    %10 = vsyncpa [#allocation5], 0
    %s11 = scalar_lea.sflag [#allocation5], 1
    %12 = vsyncpa %s11, 0
    %13 = vsyncpa [#allocation8], 0
    %s14 = scalar_lea.sflag [#allocation8], 1
    %15 = vsyncpa %s14, 0
    %16 = vsyncpa [#allocation11], 0
    %s17 = scalar_lea.sflag [#allocation11], 1
    %18 = vsyncpa %s17, 0
    %19 = vsyncpa [#allocation6], 0
    %s20 = scalar_lea.sflag [#allocation6], 1
    %21 = vsyncpa %s20, 0
    loop: start=0, step=1, limit=4
    $region2: #{tpu_custom_call.1} parent=1 // loop_pre_header
      _
    $region3: #{tpu_custom_call.1} parent=1 // loop_header
      %s23 = sphi 0, %s27
      %p24 = scmp.ge.s32.totalorder %s23, 4
      %s30 = sphi 0, %s42
      %s31 = sphi 0, %s38
      %s32 = sphi 0, %s30
      %s33 = sphi 0, %s31
      %s34 = sphi 0, %s32
      %s35 = sphi 0, %s33
      %s51 = sphi 0, %s53
      %s54 = sphi 0, %s51
      %s55 = sphi 0, %s54
      %s71 = sphi 0, %s55
      %s83 = sphi 0, %s85
      %s86 = sphi 0, %s83
      %s87 = sphi 0, %s86
      %s103 = sphi 0, %s87
      %s115 = sphi 0, %s117
      %s118 = sphi 0, %s115
      %s119 = sphi 0, %s118
      %s135 = sphi 0, %s119
      %s147 = sphi 0, %s149
      %s150 = sphi 0, %s147
      %s151 = sphi 0, %s150
      %s167 = sphi 0, %s151
      %s179 = sphi 0, %s181
      %s182 = sphi 0, %s179
      %s183 = sphi 0, %s182
      %s199 = sphi 0, %s183
      %s205 = sphi 0, %s207
      %s208 = sphi 0, %s205
      %s209 = sphi 0, %s208
      %s225 = sphi 0, %s209
    $region4: #{tpu_custom_call.1} parent=1 // loop_header_branch
      %26 = sbr.rel (%p24) target = $region8
    $region5: #{tpu_custom_call.1} parent=1 // loop_body
      %s28 = ssub.s32 %s23, 1
      %s29 = ssub.s32 %s23, 2
      %s36 = sadd.s32 1, %s31
      %p37 = scmp.ge.s32.totalorder %s36, 1
      %s38 = scalar_select %p37, 0, %s36
      %s39 = sadd.s32 1, %s30
      %s40 = scalar_select %p37, %s39, %s30
      %p41 = scmp.ge.s32.totalorder %s40, 2
      %s42 = scalar_select %p41, 0, %s40
      %s43 = sadd.s32 %s30, %s31
      %p44 = scmp.lt.s32.totalorder %s43, 0
      %s45 = scalar_select %p44, %s43, 0
      %s46 = sadd.s32 %s42, %s38
      %p47 = scmp.lt.s32.totalorder %s46, 0
      %s48 = scalar_select %p47, %s46, 0
      %s49 = ssub.s32 %s45, %s48
      %p50 = scmp.eq.s32.totalorder %s49, 0
      %s52 = sadd.s32 %s51, 1
      %s53 = scalar_select %p50, %s51, %s52
      %p56 = pneg %p50
      %p57 = scmp.eq.s32.totalorder %s23, 1
      %p58 = por %p56, %p57
      %p59 = scmp.ne.s32.totalorder %s51, %s54
      %p60 = scmp.eq.s32.totalorder %s23, 0
      %p61 = por %p59, %p60
      %p62 = scmp.ne.s32.totalorder %s51, %s54
      %p63 = scmp.eq.s32.totalorder %s28, 1
      %p64 = por %p62, %p63
      %p65 = scmp.ne.s32.totalorder %s54, %s55
      %p66 = scmp.eq.s32.totalorder %s28, 0
      %p67 = por %p65, %p66
      %p68 = scmp.ne.s32.totalorder %s54, %s55
      %p69 = scmp.eq.s32.totalorder %s29, 1
      %p70 = por %p68, %p69
      %p72 = scmp.ne.s32.totalorder %s55, %s71
      %p73 = scmp.eq.s32.totalorder %s29, 0
      %p74 = por %p72, %p73
      %s75 = sadd.s32 %s30, %s31
      %p76 = scmp.lt.s32.totalorder %s75, 0
      %s77 = scalar_select %p76, %s75, 0
      %s78 = sadd.s32 %s42, %s38
      %p79 = scmp.lt.s32.totalorder %s78, 0
      %s80 = scalar_select %p79, %s78, 0
      %s81 = ssub.s32 %s77, %s80
      %p82 = scmp.eq.s32.totalorder %s81, 0
      %s84 = sadd.s32 %s83, 1
      %s85 = scalar_select %p82, %s83, %s84
      %p88 = pneg %p82
      %p89 = scmp.eq.s32.totalorder %s23, 1
      %p90 = por %p88, %p89
      %p91 = scmp.ne.s32.totalorder %s83, %s86
      %p92 = scmp.eq.s32.totalorder %s23, 0
      %p93 = por %p91, %p92
      %p94 = scmp.ne.s32.totalorder %s83, %s86
      %p95 = scmp.eq.s32.totalorder %s28, 1
      %p96 = por %p94, %p95
      %p97 = scmp.ne.s32.totalorder %s86, %s87
      %p98 = scmp.eq.s32.totalorder %s28, 0
      %p99 = por %p97, %p98
      %p100 = scmp.ne.s32.totalorder %s86, %s87
      %p101 = scmp.eq.s32.totalorder %s29, 1
      %p102 = por %p100, %p101
      %p104 = scmp.ne.s32.totalorder %s87, %s103
      %p105 = scmp.eq.s32.totalorder %s29, 0
      %p106 = por %p104, %p105
      %s107 = sadd.s32 %s30, %s31
      %p108 = scmp.lt.s32.totalorder %s107, 0
      %s109 = scalar_select %p108, %s107, 0
      %s110 = sadd.s32 %s42, %s38
      %p111 = scmp.lt.s32.totalorder %s110, 0
      %s112 = scalar_select %p111, %s110, 0
      %s113 = ssub.s32 %s109, %s112
      %p114 = scmp.eq.s32.totalorder %s113, 0
      %s116 = sadd.s32 %s115, 1
      %s117 = scalar_select %p114, %s115, %s116
      %p120 = pneg %p114
      %p121 = scmp.eq.s32.totalorder %s23, 1
      %p122 = por %p120, %p121
      %p123 = scmp.ne.s32.totalorder %s115, %s118
      %p124 = scmp.eq.s32.totalorder %s23, 0
      %p125 = por %p123, %p124
      %p126 = scmp.ne.s32.totalorder %s115, %s118
      %p127 = scmp.eq.s32.totalorder %s28, 1
      %p128 = por %p126, %p127
      %p129 = scmp.ne.s32.totalorder %s118, %s119
      %p130 = scmp.eq.s32.totalorder %s28, 0
      %p131 = por %p129, %p130
      %p132 = scmp.ne.s32.totalorder %s118, %s119
      %p133 = scmp.eq.s32.totalorder %s29, 1
      %p134 = por %p132, %p133
      %p136 = scmp.ne.s32.totalorder %s119, %s135
      %p137 = scmp.eq.s32.totalorder %s29, 0
      %p138 = por %p136, %p137
      %s139 = sadd.s32 %s30, %s31
      %p140 = scmp.lt.s32.totalorder %s139, 0
      %s141 = scalar_select %p140, %s139, 0
      %s142 = sadd.s32 %s42, %s38
      %p143 = scmp.lt.s32.totalorder %s142, 0
      %s144 = scalar_select %p143, %s142, 0
      %s145 = ssub.s32 %s141, %s144
      %p146 = scmp.eq.s32.totalorder %s145, 0
      %s148 = sadd.s32 %s147, 1
      %s149 = scalar_select %p146, %s147, %s148
      %p152 = pneg %p146
      %p153 = scmp.eq.s32.totalorder %s23, 1
      %p154 = por %p152, %p153
      %p155 = scmp.ne.s32.totalorder %s147, %s150
      %p156 = scmp.eq.s32.totalorder %s23, 0
      %p157 = por %p155, %p156
      %p158 = scmp.ne.s32.totalorder %s147, %s150
      %p159 = scmp.eq.s32.totalorder %s28, 1
      %p160 = por %p158, %p159
      %p161 = scmp.ne.s32.totalorder %s150, %s151
      %p162 = scmp.eq.s32.totalorder %s28, 0
      %p163 = por %p161, %p162
      %p164 = scmp.ne.s32.totalorder %s150, %s151
      %p165 = scmp.eq.s32.totalorder %s29, 1
      %p166 = por %p164, %p165
      %p168 = scmp.ne.s32.totalorder %s151, %s167
      %p169 = scmp.eq.s32.totalorder %s29, 0
      %p170 = por %p168, %p169
      %s171 = sadd.s32 %s30, %s31
      %p172 = scmp.lt.s32.totalorder %s171, 0
      %s173 = scalar_select %p172, %s171, 0
      %s174 = sadd.s32 %s42, %s38
      %p175 = scmp.lt.s32.totalorder %s174, 0
      %s176 = scalar_select %p175, %s174, 0
      %s177 = ssub.s32 %s173, %s176
      %p178 = scmp.eq.s32.totalorder %s177, 0
      %s180 = sadd.s32 %s179, 1
      %s181 = scalar_select %p178, %s179, %s180
      %p184 = pneg %p178
      %p185 = scmp.eq.s32.totalorder %s23, 1
      %p186 = por %p184, %p185
      %p187 = scmp.ne.s32.totalorder %s179, %s182
      %p188 = scmp.eq.s32.totalorder %s23, 0
      %p189 = por %p187, %p188
      %p190 = scmp.ne.s32.totalorder %s179, %s182
      %p191 = scmp.eq.s32.totalorder %s28, 1
      %p192 = por %p190, %p191
      %p193 = scmp.ne.s32.totalorder %s182, %s183
      %p194 = scmp.eq.s32.totalorder %s28, 0
      %p195 = por %p193, %p194
      %p196 = scmp.ne.s32.totalorder %s182, %s183
      %p197 = scmp.eq.s32.totalorder %s29, 1
      %p198 = por %p196, %p197
      %p200 = scmp.ne.s32.totalorder %s183, %s199
      %p201 = scmp.eq.s32.totalorder %s29, 0
      %p202 = por %p200, %p201
      %s203 = ssub.s32 %s30, %s42
      %p204 = scmp.eq.s32.totalorder %s203, 0
      %s206 = sadd.s32 %s205, 1
      %s207 = scalar_select %p204, %s205, %s206
      %p210 = pneg %p204
      %p211 = scmp.eq.s32.totalorder %s23, 1
      %p212 = por %p210, %p211
      %p213 = scmp.ne.s32.totalorder %s205, %s208
      %p214 = scmp.eq.s32.totalorder %s23, 0
      %p215 = por %p213, %p214
      %p216 = scmp.ne.s32.totalorder %s205, %s208
      %p217 = scmp.eq.s32.totalorder %s28, 1
      %p218 = por %p216, %p217
      %p219 = scmp.ne.s32.totalorder %s208, %s209
      %p220 = scmp.eq.s32.totalorder %s28, 0
      %p221 = por %p219, %p220
      %p222 = scmp.ne.s32.totalorder %s208, %s209
      %p223 = scmp.eq.s32.totalorder %s29, 1
      %p224 = por %p222, %p223
      %p226 = scmp.ne.s32.totalorder %s209, %s225
      %p227 = scmp.eq.s32.totalorder %s29, 0
      %p228 = por %p226, %p227
      %p229 = scmp.le.s32.totalorder 1, %s23
      %p230 = scmp.lt.s32.totalorder %s23, 3
      %p231 = pnand %p229, %p230
      %p232 = pneg %p231
      // Predicated region
      $region9: #{tpu_custom_call.1} parent=5 // pred_check
        _
      $region10: #{tpu_custom_call.1} parent=5 // pred_check_branch
        %234 = sbr.rel (%p231) target = $region12
      $region11: #{tpu_custom_call.1} parent=5 // pred_region
        %s235 = ssub.s32 %s23, 1
      $region12: #{tpu_custom_call.1} parent=5 // pred_fallthru
        _
      %p236 = scmp.lt.s32.totalorder %s23, 2
      // Predicated region
      $region13: #{tpu_custom_call.1} parent=5 // pred_check
        %p237 = pneg %p236
      $region14: #{tpu_custom_call.1} parent=5 // pred_check_branch
        %239 = sbr.rel (%p237) target = $region16
      $region15: #{tpu_custom_call.1} parent=5 // pred_region
        // Predicated region
        $region17: #{tpu_custom_call.1} parent=15 // pred_check
          %p240 = pneg %p61
        $region18: #{tpu_custom_call.1} parent=15 // pred_check_branch
          %242 = sbr.rel (%p240) target = $region20
        $region19: #{tpu_custom_call.1} parent=15 // pred_region
          %s243 = sand.u32 %s51, 1
          %s244 = scalar_lea.sflag [#allocation5], %s243
          %s245 = sand.u32 %s51, 1
          %s246 = smul.addr %s245, 8
          %s247 = scalar_lea.vmem [#allocation4], %s246
          %s248 = sadd.s32 %s30, %s31
          %p249 = scmp.lt.s32.totalorder %s248, 0
          %s250 = scalar_select %p249, %s248, 0
          %s252 = ssub.s32 128, 128
          %253 = vsyncadd %s244, %s252
          %s254 = smul.addr %s250, 128
          %s255 = scalar_lea.hbm %s0, %s254
          %s257 = sshll.u32 %s247, 4
          %s258 = int_to_ptr.vmem [resolvable:$true] %s257
          %260 = dma.hbm_to_vmem [thread:$0]  %s255, 128, %s258, %s244
        $region20: #{tpu_custom_call.1} parent=15 // pred_fallthru
          _
        // Predicated region
        $region21: #{tpu_custom_call.1} parent=15 // pred_check
          %p261 = pneg %p93
        $region22: #{tpu_custom_call.1} parent=15 // pred_check_branch
          %263 = sbr.rel (%p261) target = $region24
        $region23: #{tpu_custom_call.1} parent=15 // pred_region
          %s264 = sand.u32 %s23, 1
          %s265 = scalar_lea.sflag [#allocation8], %s264
          %s266 = sand.u32 %s83, 1
          %s267 = smul.addr %s266, 8
          %s268 = scalar_lea.vmem [#allocation7], %s267
          %s269 = sadd.s32 %s30, %s31
          %p270 = scmp.lt.s32.totalorder %s269, 0
          %s271 = scalar_select %p270, %s269, 0
          %s273 = ssub.s32 128, 128
          %274 = vsyncadd %s265, %s273
          %s275 = smul.addr %s271, 128
          %s276 = scalar_lea.hbm %s1, %s275
          %s278 = sshll.u32 %s268, 4
          %s279 = int_to_ptr.vmem [resolvable:$true] %s278
          %281 = dma.hbm_to_vmem [thread:$0]  %s276, 128, %s279, %s265
        $region24: #{tpu_custom_call.1} parent=15 // pred_fallthru
          _
        // Predicated region
        $region25: #{tpu_custom_call.1} parent=15 // pred_check
          %p282 = pneg %p125
        $region26: #{tpu_custom_call.1} parent=15 // pred_check_branch
          %284 = sbr.rel (%p282) target = $region28
        $region27: #{tpu_custom_call.1} parent=15 // pred_region
          %s285 = sand.u32 %s23, 1
          %s286 = scalar_lea.sflag [#allocation8], %s285
          %s287 = sand.u32 %s115, 1
          %s288 = smul.addr %s287, 8
          %s289 = scalar_lea.vmem [#allocation9], %s288
          %s290 = sadd.s32 %s30, %s31
          %p291 = scmp.lt.s32.totalorder %s290, 0
          %s292 = scalar_select %p291, %s290, 0
          %s294 = ssub.s32 128, 128
          %295 = vsyncadd %s286, %s294
          %s296 = smul.addr %s292, 128
          %s297 = scalar_lea.hbm %s2, %s296
          %s299 = sshll.u32 %s289, 4
          %s300 = int_to_ptr.vmem [resolvable:$true] %s299
          %302 = dma.hbm_to_vmem [thread:$0]  %s297, 128, %s300, %s286
        $region28: #{tpu_custom_call.1} parent=15 // pred_fallthru
          _
        // Predicated region
        $region29: #{tpu_custom_call.1} parent=15 // pred_check
          %p303 = pneg %p157
        $region30: #{tpu_custom_call.1} parent=15 // pred_check_branch
          %305 = sbr.rel (%p303) target = $region32
        $region31: #{tpu_custom_call.1} parent=15 // pred_region
          %s306 = sand.u32 %s23, 1
          %s307 = scalar_lea.sflag [#allocation11], %s306
          %s308 = sand.u32 %s147, 1
          %s309 = smul.addr %s308, 8
          %s310 = scalar_lea.vmem [#allocation10], %s309
          %s311 = sadd.s32 %s30, %s31
          %p312 = scmp.lt.s32.totalorder %s311, 0
          %s313 = scalar_select %p312, %s311, 0
          %s315 = ssub.s32 128, 128
          %316 = vsyncadd %s307, %s315
          %s317 = smul.addr %s313, 128
          %s318 = scalar_lea.hbm %s3, %s317
          %s320 = sshll.u32 %s310, 4
          %s321 = int_to_ptr.vmem [resolvable:$true] %s320
          %323 = dma.hbm_to_vmem [thread:$0]  %s318, 128, %s321, %s307
        $region32: #{tpu_custom_call.1} parent=15 // pred_fallthru
          _
        // Predicated region
        $region33: #{tpu_custom_call.1} parent=15 // pred_check
          %p324 = pneg %p189
        $region34: #{tpu_custom_call.1} parent=15 // pred_check_branch
          %326 = sbr.rel (%p324) target = $region36
        $region35: #{tpu_custom_call.1} parent=15 // pred_region
          %s327 = sand.u32 %s23, 1
          %s328 = scalar_lea.sflag [#allocation11], %s327
          %s329 = sand.u32 %s179, 1
          %s330 = smul.addr %s329, 8
          %s331 = scalar_lea.vmem [#allocation12], %s330
          %s332 = sadd.s32 %s30, %s31
          %p333 = scmp.lt.s32.totalorder %s332, 0
          %s334 = scalar_select %p333, %s332, 0
          %s336 = ssub.s32 128, 128
          %337 = vsyncadd %s328, %s336
          %s338 = smul.addr %s334, 128
          %s339 = scalar_lea.hbm %s4, %s338
          %s341 = sshll.u32 %s331, 4
          %s342 = int_to_ptr.vmem [resolvable:$true] %s341
          %344 = dma.hbm_to_vmem [thread:$0]  %s339, 128, %s342, %s328
        $region36: #{tpu_custom_call.1} parent=15 // pred_fallthru
          _
      $region16: #{tpu_custom_call.1} parent=5 // pred_fallthru
        _
      %p345 = scmp.le.s32.totalorder 1, %s23
      %p346 = scmp.lt.s32.totalorder %s23, 3
      %p347 = pnand %p345, %p346
      %p348 = pneg %p347
      // Predicated region
      $region37: #{tpu_custom_call.1} parent=5 // pred_check
        _
      $region38: #{tpu_custom_call.1} parent=5 // pred_check_branch
        %350 = sbr.rel (%p347) target = $region40
      $region39: #{tpu_custom_call.1} parent=5 // pred_region
        %s351 = ssub.s32 %s23, 1
        %s352 = sand.u32 %s54, 1
        %s353 = scalar_lea.sflag [#allocation5], %s352
        %s354 = sand.u32 %s54, 1
        %s355 = smul.addr %s354, 8
        %s356 = scalar_lea.vmem [#allocation4], %s355
        // Predicated region
        $region41: #{tpu_custom_call.1} parent=39 // pred_check
          %p357 = pneg %p67
        $region42: #{tpu_custom_call.1} parent=39 // pred_check_branch
          %359 = sbr.rel (%p357) target = $region44
        $region43: #{tpu_custom_call.1} parent=39 // pred_region
          %360 = dma.done %s353, 128
        $region44: #{tpu_custom_call.1} parent=39 // pred_fallthru
          _
        %s361 = sand.u32 %s28, 1
        %s362 = scalar_lea.sflag [#allocation8], %s361
        %s363 = sand.u32 %s86, 1
        %s364 = smul.addr %s363, 8
        %s365 = scalar_lea.vmem [#allocation7], %s364
        // Predicated region
        $region45: #{tpu_custom_call.1} parent=39 // pred_check
          %p366 = pneg %p99
        $region46: #{tpu_custom_call.1} parent=39 // pred_check_branch
          %368 = sbr.rel (%p366) target = $region48
        $region47: #{tpu_custom_call.1} parent=39 // pred_region
          %369 = dma.done %s362, 128
        $region48: #{tpu_custom_call.1} parent=39 // pred_fallthru
          _
        %s370 = sand.u32 %s28, 1
        %s371 = scalar_lea.sflag [#allocation8], %s370
        %s372 = sand.u32 %s118, 1
        %s373 = smul.addr %s372, 8
        %s374 = scalar_lea.vmem [#allocation9], %s373
        // Predicated region
        $region49: #{tpu_custom_call.1} parent=39 // pred_check
          %p375 = pneg %p131
        $region50: #{tpu_custom_call.1} parent=39 // pred_check_branch
          %377 = sbr.rel (%p375) target = $region52
        $region51: #{tpu_custom_call.1} parent=39 // pred_region
          %378 = dma.done %s371, 128
        $region52: #{tpu_custom_call.1} parent=39 // pred_fallthru
          _
        %s379 = sand.u32 %s28, 1
        %s380 = scalar_lea.sflag [#allocation11], %s379
        %s381 = sand.u32 %s150, 1
        %s382 = smul.addr %s381, 8
        %s383 = scalar_lea.vmem [#allocation10], %s382
        // Predicated region
        $region53: #{tpu_custom_call.1} parent=39 // pred_check
          %p384 = pneg %p163
        $region54: #{tpu_custom_call.1} parent=39 // pred_check_branch
          %386 = sbr.rel (%p384) target = $region56
        $region55: #{tpu_custom_call.1} parent=39 // pred_region
          %387 = dma.done %s380, 128
        $region56: #{tpu_custom_call.1} parent=39 // pred_fallthru
          _
        %s388 = sand.u32 %s28, 1
        %s389 = scalar_lea.sflag [#allocation11], %s388
        %s390 = sand.u32 %s182, 1
        %s391 = smul.addr %s390, 8
        %s392 = scalar_lea.vmem [#allocation12], %s391
        // Predicated region
        $region57: #{tpu_custom_call.1} parent=39 // pred_check
          %p393 = pneg %p195
        $region58: #{tpu_custom_call.1} parent=39 // pred_check_branch
          %395 = sbr.rel (%p393) target = $region60
        $region59: #{tpu_custom_call.1} parent=39 // pred_region
          %396 = dma.done %s389, 128
        $region60: #{tpu_custom_call.1} parent=39 // pred_fallthru
          _
        %s397 = sand.u32 %s54, 1
        %s398 = scalar_lea.sflag [#allocation5], %s397
        %s399 = sand.u32 %s54, 1
        %s400 = smul.addr %s399, 8
        %s401 = scalar_lea.vmem [#allocation4], %s400
        %p402 = pneg %p67
        %p403 = pneg %p64
        %s404 = sand.u32 %s28, 1
        %s405 = scalar_lea.sflag [#allocation8], %s404
        %s406 = sand.u32 %s86, 1
        %s407 = smul.addr %s406, 8
        %s408 = scalar_lea.vmem [#allocation7], %s407
        %p409 = pneg %p99
        %p410 = pneg %p96
        %s411 = sand.u32 %s28, 1
        %s412 = scalar_lea.sflag [#allocation8], %s411
        %s413 = sand.u32 %s118, 1
        %s414 = smul.addr %s413, 8
        %s415 = scalar_lea.vmem [#allocation9], %s414
        %p416 = pneg %p131
        %p417 = pneg %p128
        %s418 = sand.u32 %s28, 1
        %s419 = scalar_lea.sflag [#allocation11], %s418
        %s420 = sand.u32 %s150, 1
        %s421 = smul.addr %s420, 8
        %s422 = scalar_lea.vmem [#allocation10], %s421
        %p423 = pneg %p163
        %p424 = pneg %p160
        %s425 = sand.u32 %s28, 1
        %s426 = scalar_lea.sflag [#allocation11], %s425
        %s427 = sand.u32 %s182, 1
        %s428 = smul.addr %s427, 8
        %s429 = scalar_lea.vmem [#allocation12], %s428
        %p430 = pneg %p195
        %p431 = pneg %p192
        %p432 = pneg %p221
        %p433 = pneg %p218
        %s434 = sand.u32 %s208, 1
        %s435 = scalar_lea.sflag [#allocation6], %s434
        %s436 = sand.u32 %s208, 1
        %s437 = smul.addr %s436, 8
        %s438 = scalar_lea.vmem [#allocation13], %s437
        %s439 = sadd.s32 %s32, %s33
        %p440 = scmp.lt.s32.totalorder %s439, 0
        %s441 = scalar_select %p440, %s439, 0
        %s442 = sadd.s32 %s32, %s33
        %p443 = scmp.lt.s32.totalorder %s442, 0
        %s444 = scalar_select %p443, %s442, 0
        %s445 = sadd.s32 %s32, %s33
        %p446 = scmp.lt.s32.totalorder %s445, 0
        %s447 = scalar_select %p446, %s445, 0
        %s448 = sadd.s32 %s32, %s33
        %p449 = scmp.lt.s32.totalorder %s448, 0
        %s450 = scalar_select %p449, %s448, 0
        %s451 = sadd.s32 %s32, %s33
        %p452 = scmp.lt.s32.totalorder %s451, 0
        %s453 = scalar_select %p452, %s451, 0
        %p454 = scmp.eq.s32.totalorder %s33, 0
        // Predicated region
        $region61: #{tpu_custom_call.1} parent=39 // pred_check
          %p455 = pneg %p454
        $region62: #{tpu_custom_call.1} parent=39 // pred_check_branch
          %457 = sbr.rel (%p455) target = $region64
        $region63: #{tpu_custom_call.1} parent=39 // pred_region
          %458 = vst [vmem:[#allocation2] sm:$0xff] 0.0
          %459 = vst [vmem:[#allocation3] sm:$0xff] 0.0
        $region64: #{tpu_custom_call.1} parent=39 // pred_fallthru
          _
        %s460 = sadd.s32 %s32, %s33
        %p461 = scmp.lt.s32.totalorder %s33, 1
        %p462 = scmp.lt.s32.totalorder %s460, 1
        %p463 = pnand %p461, %p462
        %p464 = pneg %p463
        // Predicated region
        $region65: #{tpu_custom_call.1} parent=39 // pred_check
          _
        $region66: #{tpu_custom_call.1} parent=39 // pred_check_branch
          %466 = sbr.rel (%p463) target = $region68
        $region67: #{tpu_custom_call.1} parent=39 // pred_region
          %v467 = vld [vmem:[%s356] sm:$0xff]
          %v468 = vld [vmem:[#allocation2] sm:$0xff]
          %v469 = vmul.f32 %v467, %v467
          %v470 = vadd.f32 %v469, 0.0
          %v471 = vadd.f32 %v468, %v470
          %472 = vst [vmem:[#allocation2] sm:$0xff] %v471
          %v473 = vld [vmem:[%s365] sm:$0xff]
          %v474 = vld [vmem:[%s374] sm:$0xff]
          %v475 = vld [vmem:[#allocation2] sm:$0xff]
          %v476 = vmul.f32 %v474, %v473
          %v477 = vadd.f32 %v476, 0.0
          %v478 = vmul.f32 %v477, -2.0
          %v479 = vadd.f32 %v475, %v478
          %480 = vst [vmem:[#allocation2] sm:$0xff] %v479
          %v481 = vld [vmem:[%s383] sm:$0xff]
          %v482 = vld [vmem:[%s392] sm:$0xff]
          %v483 = vsub.f32 %v481, %v482
          %v484 = vld [vmem:[#allocation3] sm:$0xff]
          %v485 = vmul.f32 %v483, %v483
          %v486 = vadd.f32 %v485, 0.0
          %v487 = vadd.f32 %v484, %v486
          %488 = vst [vmem:[#allocation3] sm:$0xff] %v487
        $region68: #{tpu_custom_call.1} parent=39 // pred_fallthru
          _
        // Predicated region
        $region69: #{tpu_custom_call.1} parent=39 // pred_check
          %p489 = pneg %p454
        $region70: #{tpu_custom_call.1} parent=39 // pred_check_branch
          %491 = sbr.rel (%p489) target = $region72
        $region71: #{tpu_custom_call.1} parent=39 // pred_region
          %v492 = vld [vmem:[#allocation2] sm:$0xff]
          %v493 = vmul.f32 %v492, 0.006666667
          %v494 = vld [vmem:[#allocation3] sm:$0xff]
          %v495 = vmul.f32 %v494, 5.0
          %v496 = vadd.f32 %v493, %v495
          %497 = vst [vmem:[%s438] sm:$0xff] %v496
        $region72: #{tpu_custom_call.1} parent=39 // pred_fallthru
          _
        %s498 = sand.u32 %s208, 1
        %s499 = scalar_lea.sflag [#allocation6], %s498
        %s500 = sand.u32 %s208, 1
        %s501 = smul.addr %s500, 8
        %s502 = scalar_lea.vmem [#allocation13], %s501
        // Predicated region
        $region73: #{tpu_custom_call.1} parent=39 // pred_check
          %p503 = pneg %p218
        $region74: #{tpu_custom_call.1} parent=39 // pred_check_branch
          %505 = sbr.rel (%p503) target = $region76
        $region75: #{tpu_custom_call.1} parent=39 // pred_region
          %s507 = ssub.s32 128, 128
          %508 = vsyncadd %s499, %s507
          %s509 = smul.addr %s32, 128
          %s510 = scalar_lea.hbm %s5, %s509
          %s512 = sshll.u32 %s502, 4
          %s513 = int_to_ptr.vmem [resolvable:$true] %s512
          %515 = dma.vmem_to_hbm [thread:$0]  %s513, 128, %s510, %s499
        $region76: #{tpu_custom_call.1} parent=39 // pred_fallthru
          _
      $region40: #{tpu_custom_call.1} parent=5 // pred_fallthru
        _
      %p516 = scmp.le.s32.totalorder 2, %s23
      // Predicated region
      $region77: #{tpu_custom_call.1} parent=5 // pred_check
        %p517 = pneg %p516
      $region78: #{tpu_custom_call.1} parent=5 // pred_check_branch
        %519 = sbr.rel (%p517) target = $region80
      $region79: #{tpu_custom_call.1} parent=5 // pred_region
        %s520 = ssub.s32 %s23, 2
        // Predicated region
        $region81: #{tpu_custom_call.1} parent=79 // pred_check
          %p521 = pneg %p224
        $region82: #{tpu_custom_call.1} parent=79 // pred_check_branch
          %523 = sbr.rel (%p521) target = $region84
        $region83: #{tpu_custom_call.1} parent=79 // pred_region
          %s524 = sand.u32 %s209, 1
          %s525 = scalar_lea.sflag [#allocation6], %s524
          %s526 = sand.u32 %s209, 1
          %s527 = smul.addr %s526, 8
          %s528 = scalar_lea.vmem [#allocation13], %s527
          %529 = dma.done %s525, 128
        $region84: #{tpu_custom_call.1} parent=79 // pred_fallthru
          _
      $region80: #{tpu_custom_call.1} parent=5 // pred_fallthru
        _
    $region6: #{tpu_custom_call.1} parent=1 // loop_footer
      %s27 = sadd.s32 1, %s23
    $region7: #{tpu_custom_call.1} parent=1 // loop_footer_branch
      %22 = sbr.rel target = $region3
    $region8: #{tpu_custom_call.1} parent=1 // loop_exit
      _
    %530 = vsyncpa [#allocation5], 1
    %s531 = scalar_lea.sflag [#allocation5], 1
    %532 = vsyncpa %s531, 1
    %533 = vsyncpa [#allocation8], 1
    %s534 = scalar_lea.sflag [#allocation8], 1
    %535 = vsyncpa %s534, 1
    %536 = vsyncpa [#allocation11], 1
    %s537 = scalar_lea.sflag [#allocation11], 1
    %538 = vsyncpa %s537, 1
    %539 = vsyncpa [#allocation6], 1
    %s540 = scalar_lea.sflag [#allocation6], 1
    %541 = vsyncpa %s540, 1

</llo_original>
